<compile_context>
chip_gen: v7x
topology: tpu7x:2x2x1
jax: 0.10.0
libtpu: 0.0.40
codegen_flags: <defaults>
</compile_context>

<pallas_src>
import jax
import jax.numpy as jnp
from jax.experimental import pallas as pl
from jax.experimental.pallas import tpu as pltpu


def _round_up(a, b):
    return ((a + b - 1) // b) * b


def _geglu_kernel(x_ref, w_ref, b_ref, o_ref):
    # x_ref: (tm, K)     activation tile
    # w_ref: (K, 2*tn)   [hidden | gate] weight columns for this N tile
    # b_ref: (1, 2*tn)   [hidden | gate] bias (f32)
    # o_ref: (tm, tn)    output tile
    tn = o_ref.shape[-1]
    # One wide matmul for both halves (same LHS), f32 accumulation on the MXU.
    acc = jnp.dot(x_ref[...], w_ref[...], preferred_element_type=jnp.float32)
    acc = acc + b_ref[...]
    h = acc[:, :tn]
    g = acc[:, tn:]
    # Exact (erf-based) GELU in f32, matching torch.nn.functional.gelu default.
    gelu_g = 0.5 * g * (1.0 + jax.lax.erf(g * jnp.float32(0.7071067811865476)))
    o_ref[...] = (h * gelu_g).astype(o_ref.dtype)


def geglu_prepare(weight, bias, *, tn=512, compute_dtype=None):
    """One-time packing of nn.Linear(dim_in, 2*dim_out) params for the kernel.

    weight: (2*dim_out, dim_in) in PyTorch layout; bias: (2*dim_out,).
    Do this once outside the per-step call path — it contains the only transposes.
    """
    two_n, dim_in = weight.shape
    dim_out = two_n // 2
    compute_dtype = compute_dtype or weight.dtype

    # Pad dim_out up to a multiple of 128 lanes, then pick a tn dividing it.
    n_pad = _round_up(dim_out, 128)
    tn_eff = 128
    for t in (tn, 512, 256, 128):
        if 128 <= t <= n_pad and n_pad % t == 0:
            tn_eff = t
            break
    n_tiles = n_pad // tn_eff

    w_h = weight[:dim_out, :]
    w_g = weight[dim_out:, :]
    b_h = bias[:dim_out]
    b_g = bias[dim_out:]
    pad = n_pad - dim_out
    if pad:
        w_h = jnp.pad(w_h, ((0, pad), (0, 0)))
        w_g = jnp.pad(w_g, ((0, pad), (0, 0)))
        b_h = jnp.pad(b_h, (0, pad))
        b_g = jnp.pad(b_g, (0, pad))

    # (K, 2*n_pad) with hidden/gate columns interleaved per N tile:
    #   packed[:, j*2*tn : j*2*tn+tn]     = hidden columns of tile j
    #   packed[:, j*2*tn+tn : (j+1)*2*tn] = gate   columns of tile j
    w_h_t = w_h.T.reshape(dim_in, n_tiles, tn_eff)
    w_g_t = w_g.T.reshape(dim_in, n_tiles, tn_eff)
    w_packed = jnp.concatenate([w_h_t, w_g_t], axis=2).reshape(dim_in, 2 * n_pad)
    b_packed = jnp.concatenate(
        [b_h.reshape(n_tiles, tn_eff), b_g.reshape(n_tiles, tn_eff)], axis=1
    ).reshape(1, 2 * n_pad)

    return dict(
        w_packed=w_packed.astype(compute_dtype),
        b_packed=b_packed.astype(jnp.float32),  # bias added after f32 accumulation
        dim_in=dim_in,
        dim_out=dim_out,
        n_pad=n_pad,
        tn=tn_eff,
    )


def geglu_apply(x, params, *, tm=256):
    """GEGLU forward: x (..., dim_in) -> (..., dim_out)."""
    w_packed = params["w_packed"]
    b_packed = params["b_packed"]
    dim_in = params["dim_in"]
    dim_out = params["dim_out"]
    n_pad = params["n_pad"]
    tn = params["tn"]

    *lead, k = x.shape
    assert k == dim_in, "input feature dim mismatch"

    x2d = x.reshape(-1, dim_in)
    M = x2d.shape[0]

    # Row tile: multiple of 32 sublanes (covers f32/bf16/int8 min tiles); pad
    # ragged M up to a whole number of tiles instead of asserting divisibility.
    tm_eff = min(tm, _round_up(M, 32))
    m_pad = _round_up(M, tm_eff)
    if m_pad != M:
        x2d = jnp.pad(x2d, ((0, m_pad - M), (0, 0)))
    x2d = x2d.astype(w_packed.dtype)

    grid = (m_pad // tm_eff, n_pad // tn)

    # Scoped-VMEM budget from the chosen tiles (double-buffered pipeline) plus
    # headroom for f32 intermediates; capped at 64 MiB so it also fits v7x.
    item = jnp.dtype(w_packed.dtype).itemsize
    out_item = jnp.dtype(x.dtype).itemsize
    block_bytes = (
        tm_eff * dim_in * item        # x tile
        + dim_in * 2 * tn * item      # packed weight tile
        + 2 * tn * 4                  # bias tile
        + tm_eff * tn * out_item      # output tile
    )
    vmem_bytes = 2 * block_bytes + 4 * tm_eff * 2 * tn * 4
    vmem_bytes = min(max(int(vmem_bytes * 1.25) + (4 << 20), 16 << 20), 64 << 20)

    # TODO(synk): add a K ("arbitrary") grid axis + f32 accumulator scratch if
    # dim_in ever grows large enough that the (K, 2*tn) weight tile strains VMEM.
    out = pl.pallas_call(
        _geglu_kernel,
        out_shape=jax.ShapeDtypeStruct((m_pad, n_pad), x.dtype),
        grid_spec=pltpu.PrefetchScalarGridSpec(
            num_scalar_prefetch=0,
            grid=grid,
            in_specs=[
                pl.BlockSpec((tm_eff, dim_in), lambda i, j: (i, 0)),
                pl.BlockSpec((dim_in, 2 * tn), lambda i, j: (0, j)),
                pl.BlockSpec((1, 2 * tn), lambda i, j: (0, j)),
            ],
            out_specs=pl.BlockSpec((tm_eff, tn), lambda i, j: (i, j)),
        ),
        compiler_params=pltpu.CompilerParams(
            dimension_semantics=("parallel", "parallel"),
            vmem_limit_bytes=vmem_bytes,
        ),
    )(x2d, w_packed, b_packed)

    return out[:M, :dim_out].reshape(*lead, dim_out)


def geglu(x, weight, bias, *, tm=256, tn=512, compute_dtype=None):
    """Convenience wrapper (prepare + apply). In real use, hoist geglu_prepare()
    out of the step function so the weight packing/transpose happens once."""
    params = geglu_prepare(weight, bias, tn=tn, compute_dtype=compute_dtype)
    return geglu_apply(x, params, tm=tm)


if __name__ == "__main__":
    # Small shapes consistent with the module: batch=2, seq=8, dim_in=32, dim_out=32.
    batch, seq, dim_in, dim_out = 2, 8, 32, 32

    key = jax.random.PRNGKey(0)
    kx, kw, kb = jax.random.split(key, 3)

    x = jax.random.normal(kx, (batch, seq, dim_in), dtype=jnp.float32)
    # nn.Linear(dim_in, 2*dim_out): weight (2*dim_out, dim_in), bias (2*dim_out,)
    weight = jax.random.normal(kw, (2 * dim_out, dim_in), dtype=jnp.float32) * 0.05
    bias = jax.random.normal(kb, (2 * dim_out,), dtype=jnp.float32) * 0.05

    params = geglu_prepare(weight, bias)  # one-time packing (no per-call transposes)
    out = geglu_apply(x, params)
    out = jax.block_until_ready(out)

    # Plain-JAX reference.
    proj = x.reshape(-1, dim_in) @ weight.T + bias
    h_ref, g_ref = proj[:, :dim_out], proj[:, dim_out:]
    ref = (h_ref * (0.5 * g_ref * (1.0 + jax.lax.erf(g_ref / jnp.sqrt(2.0))))).reshape(
        batch, seq, dim_out
    )
    assert out.shape == (batch, seq, dim_out)
    assert jnp.allclose(out, ref, atol=1e-4, rtol=1e-4), "mismatch vs reference"

    print("KERNEL_OK")
</pallas_src>

<mosaic_0001>
module attributes {stable_mosaic.version = 11 : i64} {
  func.func @_geglu_kernel(%arg0: i32, %arg1: i32, %arg2: memref<32x32xf32, #tpu.memory_space<vmem>>, %arg3: memref<32x256xf32, #tpu.memory_space<vmem>>, %arg4: memref<1x256xf32, #tpu.memory_space<vmem>>, %arg5: memref<32x128xf32, #tpu.memory_space<vmem>>) attributes {dimension_semantics = [#tpu.dimension_semantics<parallel>, #tpu.dimension_semantics<parallel>], iteration_bounds = array<i64: 1, 1>, scalar_prefetch = 0 : i64, scratch_operands = 0 : i64, tpu.core_type = #tpu.core_type<tc>, window_params = [{transform_indices = @transform_0, window_bounds = array<i64: 32, 32>}, {transform_indices = @transform_1, window_bounds = array<i64: 32, 256>}, {transform_indices = @transform_2, window_bounds = array<i64: 1, 256>}, {transform_indices = @transform_3, window_bounds = array<i64: 32, 128>}]} {
    %c0 = arith.constant 0 : index
    %c0_0 = arith.constant 0 : index
    %0 = vector.load %arg2[%c0, %c0_0] : memref<32x32xf32, #tpu.memory_space<vmem>>, vector<32x32xf32>
    %c0_1 = arith.constant 0 : index
    %c0_2 = arith.constant 0 : index
    %1 = vector.load %arg3[%c0_1, %c0_2] : memref<32x256xf32, #tpu.memory_space<vmem>>, vector<32x256xf32>
    %cst = arith.constant dense<0.000000e+00> : vector<32x256xf32>
    %2 = tpu.matmul %0, %1, %cst {dimension_numbers = #tpu.dot_dimension_numbers<[1], [0], [0], [1], [0, 0, 1, 1], [], []>} : vector<32x32xf32>, vector<32x256xf32>, vector<32x256xf32> -> vector<32x256xf32>
    %c0_3 = arith.constant 0 : index
    %c0_4 = arith.constant 0 : index
    %3 = vector.load %arg4[%c0_3, %c0_4] : memref<1x256xf32, #tpu.memory_space<vmem>>, vector<1x256xf32>
    %4 = vector.broadcast %3 : vector<1x256xf32> to vector<32x256xf32>
    %5 = arith.addf %2, %4 : vector<32x256xf32>
    %6 = vector.extract_strided_slice %5 {offsets = [0, 0], sizes = [32, 128], strides = [1, 1]} : vector<32x256xf32> to vector<32x128xf32>
    %7 = vector.extract_strided_slice %5 {offsets = [0, 128], sizes = [32, 128], strides = [1, 1]} : vector<32x256xf32> to vector<32x128xf32>
    %cst_5 = arith.constant 5.000000e-01 : f32
    %8 = vector.broadcast %cst_5 : f32 to vector<32x128xf32>
    %9 = arith.mulf %8, %7 : vector<32x128xf32>
    %cst_6 = arith.constant 0.707106769 : f32
    %10 = vector.broadcast %cst_6 : f32 to vector<32x128xf32>
    %11 = arith.mulf %7, %10 : vector<32x128xf32>
    %12 = math.erf %11 : vector<32x128xf32>
    %cst_7 = arith.constant 1.000000e+00 : f32
    %13 = vector.broadcast %cst_7 : f32 to vector<32x128xf32>
    %14 = arith.addf %13, %12 : vector<32x128xf32>
    %15 = arith.mulf %9, %14 : vector<32x128xf32>
    %16 = arith.mulf %6, %15 : vector<32x128xf32>
    %c0_8 = arith.constant 0 : index
    %c0_9 = arith.constant 0 : index
    %17 = vector.load %arg5[%c0_8, %c0_9] : memref<32x128xf32, #tpu.memory_space<vmem>>, vector<32x128xf32>
    tpu.vector_store %arg5[%c0_8, %c0_9], %16 {strides = array<i32>} : memref<32x128xf32, #tpu.memory_space<vmem>>, vector<32x128xf32>,
    return
  }
  func.func @transform_0(%arg0: i32, %arg1: i32) -> (i32, i32) {
    %c0_i32 = arith.constant 0 : i32
    %c0_i32_0 = arith.constant 0 : i32
    return %arg0, %c0_i32 : i32, i32
  }
  func.func @transform_1(%arg0: i32, %arg1: i32) -> (i32, i32) {
    %c0_i32 = arith.constant 0 : i32
    %c0_i32_0 = arith.constant 0 : i32
    return %c0_i32, %arg1 : i32, i32
  }
  func.func @transform_2(%arg0: i32, %arg1: i32) -> (i32, i32) {
    %c0_i32 = arith.constant 0 : i32
    %c0_i32_0 = arith.constant 0 : i32
    return %c0_i32, %arg1 : i32, i32
  }
  func.func @transform_3(%arg0: i32, %arg1: i32) -> (i32, i32) {
    %c0_i32 = arith.constant 0 : i32
    return %arg0, %arg1 : i32, i32
  }
}

</mosaic_0001>

<llo_original>
// kernel: tpu_custom_call.1
$region0: #{tpu_custom_call.1}
  #allocation0 [shape = 'u32[]', space=smem, size = 0x4, offset = 0x4, fixed_abs, tag = 'smem constant byte address 0x4 - core index']
  #allocation1 [shape = 'u32[144,128]{1,0:T(1,128)}', space=vmem, size = 0x12000, scoped, tag = 'internal scratch']
  %s0 = inlined_call_operand.hbm [shape: f32[32,32], index: 0, kind: input, shape index: {}]
  %s1 = inlined_call_operand.hbm [shape: f32[32,256], index: 1, kind: input, shape index: {}]
  %s2 = inlined_call_operand.vmem [shape: f32[1,256], index: 2, kind: input, shape index: {}]
  %s3 = inlined_call_operand.hbm [shape: f32[32,128], index: 3, kind: output, shape index: {}]
  %s4 = sld [smem:[#allocation0]]
  $region30: #{tpu_custom_call.1} parent=0
    _
  %s6 = ssub.s32 1, %s4
  %s7 = scalar_select 0, %s6, %s4
  $region1: #{tpu_custom_call.1} parent=0
    #allocation2 [shape = 'u8[16384]{0}', space=vmem, size = 0x4000, scoped, tag = 'input window, operand 0, single buffered']
    #allocation3 [shape = 's32[1]{0}', space=sflag, size = 0x4, scoped, tag = 'scoped memory for tpu_custom_call.1']
    #allocation4 [shape = 's32[1]{0}', space=sflag, size = 0x4, scoped, tag = 'scoped memory for tpu_custom_call.1']
    #allocation5 [shape = 'u8[32768]{0}', space=vmem, size = 0x8000, scoped, tag = 'input window, operand 1, single buffered']
    #allocation6 [shape = 's32[1]{0}', space=sflag, size = 0x4, scoped, tag = 'scoped memory for tpu_custom_call.1']
    #allocation7 [shape = 'u8[16384]{0}', space=vmem, size = 0x4000, scoped, tag = 'output window, operand 0, single buffered']
    %8 = vsyncpa [#allocation3], 0
    %9 = vsyncpa [#allocation6], 0
    %10 = vsyncpa [#allocation4], 0
    // Predicated region
    $region2: #{tpu_custom_call.1} parent=1 // pred_check
      _
    $region3: #{tpu_custom_call.1} parent=1 // pred_check_branch
      %12 = sbr.rel (0) target = $region5
    $region4: #{tpu_custom_call.1} parent=1 // pred_region
      %s14 = ssub.s32 512, 512
      %15 = vsyncadd [#allocation3], %s14
      %s16 = sshll.u32 [#allocation2], 4
      %s17 = int_to_ptr.vmem [resolvable:$true] %s16
      %22 = dma.hbm_to_vmem [thread:$0]  %s0, 512, %s17, [#allocation3], 128, 128, 8
    $region5: #{tpu_custom_call.1} parent=1 // pred_fallthru
      _
    // Predicated region
    $region6: #{tpu_custom_call.1} parent=1 // pred_check
      _
    $region7: #{tpu_custom_call.1} parent=1 // pred_check_branch
      %24 = sbr.rel (0) target = $region9
    $region8: #{tpu_custom_call.1} parent=1 // pred_region
      %s26 = ssub.s32 1024, 1024
      %27 = vsyncadd [#allocation6], %s26
      %s28 = sshll.u32 [#allocation5], 4
      %s29 = int_to_ptr.vmem [resolvable:$true] %s28
      %34 = dma.hbm_to_vmem [thread:$0]  %s1, 1024, %s29, [#allocation6], 256, 256, 16
    $region9: #{tpu_custom_call.1} parent=1 // pred_fallthru
      _
    // Predicated region
    $region10: #{tpu_custom_call.1} parent=1 // pred_check
      _
    $region11: #{tpu_custom_call.1} parent=1 // pred_check_branch
      %36 = sbr.rel (0) target = $region13
    $region12: #{tpu_custom_call.1} parent=1 // pred_region
      _
    $region13: #{tpu_custom_call.1} parent=1 // pred_fallthru
      _
    // Predicated region
    $region14: #{tpu_custom_call.1} parent=1 // pred_check
      _
    $region15: #{tpu_custom_call.1} parent=1 // pred_check_branch
      %38 = sbr.rel (0) target = $region17
    $region16: #{tpu_custom_call.1} parent=1 // pred_region
      %39 = dma.done [#allocation3], 512
    $region17: #{tpu_custom_call.1} parent=1 // pred_fallthru
      _
    // Predicated region
    $region18: #{tpu_custom_call.1} parent=1 // pred_check
      _
    $region19: #{tpu_custom_call.1} parent=1 // pred_check_branch
      %41 = sbr.rel (0) target = $region21
    $region20: #{tpu_custom_call.1} parent=1 // pred_region
      %42 = dma.done [#allocation6], 1024
    $region21: #{tpu_custom_call.1} parent=1 // pred_fallthru
      _
    %v43 = vld [vmem:[#allocation2] sm:$0xff]
    %v44 = vld [vmem:[#allocation2 + $0x8] sm:$0xff]
    %v45 = vld [vmem:[#allocation2 + $0x10] sm:$0xff]
    %v46 = vld [vmem:[#allocation2 + $0x18] sm:$0xff]
    %v47 = vld [vmem:[#allocation5] sm:$0xff]
    %v48 = vld [vmem:[#allocation5 + $0x8] sm:$0xff]
    %v49 = vld [vmem:[#allocation5 + $0x10] sm:$0xff]
    %v50 = vld [vmem:[#allocation5 + $0x18] sm:$0xff]
    %v51 = vld [vmem:[#allocation5 + $0x20] sm:$0xff]
    %v52 = vld [vmem:[#allocation5 + $0x28] sm:$0xff]
    %v53 = vld [vmem:[#allocation5 + $0x30] sm:$0xff]
    %v54 = vld [vmem:[#allocation5 + $0x38] sm:$0xff]
    %v55 = vld [vmem:[%s2] sm:$0x3]
    %v57 = vlaneseq
    %v58 = vshrl.u32 %v57, 7
    %v59 = vsub.s32 0, %v58
    %v60 = vrot.slane %v55, %v59
    %v61 = vlaneseq
    %v62 = vshrl.u32 %v61, 7
    %v63 = vsub.s32 1, %v62
    %v64 = vrot.slane %v55, %v63
    %vm67 = vcmask 261120
    %v69 = vsel %vm67, %v43, 0
    %v72 = vsel %vm67, %v44, 0
    %v75 = vsel %vm67, %v45, 0
    %v78 = vsel %vm67, %v46, 0
    %80 = vmatprep.subr.mxu0 %v48
    %81 = vmatpush1.msra.mxu0 %v47
    %82 = vmatprep.subr.mxu0 %v50
    %83 = vmatpush1.msra.mxu0 %v49
    %84 = vmatprep.subr.mxu0 %v52
    %85 = vmatpush1.msra.mxu0 %v51
    %86 = vmatprep.subr.mxu0 %v54
    %87 = vmatpush1.msra.mxu0 %v53
    %88 = vmatprep.subr.mxu0 0.0
    %89 = vmatpush1.msra.mxu0 0.0
    %90 = vmatprep.subr.mxu0 0.0
    %91 = vmatpush1.msra.mxu0 0.0
    %92 = vmatprep.subr.mxu0 0.0
    %93 = vmatpush1.msra.mxu0 0.0
    %94 = vmatprep.subr.mxu0 0.0
    %95 = vmatpush1.msra.mxu0 0.0
    %96 = vmatprep.subr.mxu0 0.0
    %97 = vmatpush1.msra.mxu0 0.0
    %98 = vmatprep.subr.mxu0 0.0
    %99 = vmatpush1.msra.mxu0 0.0
    %100 = vmatprep.subr.mxu0 0.0
    %101 = vmatpush1.msra.mxu0 0.0
    %102 = vmatprep.subr.mxu0 0.0
    %103 = vmatpush1.msra.mxu0 0.0
    %104 = vmatprep.subr.mxu0 0.0
    %105 = vmatpush1.msra.mxu0 0.0
    %106 = vmatprep.subr.mxu0 0.0
    %107 = vmatpush1.msra.mxu0 0.0
    %108 = vmatprep.subr.mxu0 0.0
    %109 = vmatpush1.msra.mxu0 0.0
    %110 = vmatprep.subr.mxu0 0.0
    %111 = vmatpush1.msra.mxu0 0.0
    %112 = vmatprep.subr.mxu0 0.0
    %113 = vmatpush1.msra.mxu0 0.0
    %114 = vmatprep.subr.mxu0 0.0
    %115 = vmatpush1.msra.mxu0 0.0
    %116 = vmatprep.subr.mxu0 0.0
    %117 = vmatpush1.msra.mxu0 0.0
    %118 = vmatprep.subr.mxu0 0.0
    %119 = vmatpush1.msra.mxu0 0.0
    %120 = vmatprep.subr.mxu0 0.0
    %121 = vmatpush1.msra.mxu0 0.0
    %122 = vmatprep.subr.mxu0 0.0
    %123 = vmatpush1.msra.mxu0 0.0
    %124 = vmatprep.subr.mxu0 0.0
    %125 = vmatpush1.msra.mxu0 0.0
    %126 = vmatprep.subr.mxu0 0.0
    %127 = vmatpush1.msra.mxu0 0.0
    %128 = vmatprep.subr.mxu0 0.0
    %129 = vmatpush1.msra.mxu0 0.0
    %130 = vmatprep.subr.mxu0 0.0
    %131 = vmatpush1.msra.mxu0 0.0
    %132 = vmatprep.subr.mxu0 0.0
    %133 = vmatpush1.msra.mxu0 0.0
    %134 = vmatprep.subr.mxu0 0.0
    %135 = vmatpush1.msra.mxu0 0.0
    %136 = vmatprep.subr.mxu0 0.0
    %137 = vmatpush1.msra.mxu0 0.0
    %138 = vmatprep.subr.mxu0 0.0
    %139 = vmatpush1.msra.mxu0 0.0
    %140 = vmatprep.subr.mxu0 0.0
    %141 = vmatpush1.msra.mxu0 0.0
    %142 = vmatprep.subr.mxu0 0.0
    %143 = vmatpush1.msra.mxu0 0.0
    %144 = vmatprep.mubr.f32.mxu0 0.0
    %145 = vmatmul.mubr.f32.gmra.mrb[0].mxu0 %v69
    %v146 = vpop.f32.mrb[0].mxu0
    %v147 = vadd.f32 %v60, %v146
    %v148 = vpop.f32.mrb[0].mxu0
    %v149 = vadd.f32 %v64, %v148
    %150 = vmatprep.mubr.f32.mxu0 0.0
    %151 = vmatmul.mubr.f32.gmra.mrb[0].mxu0 %v72
    %v152 = vpop.f32.mrb[0].mxu0
    %v153 = vadd.f32 %v60, %v152
    %v154 = vpop.f32.mrb[0].mxu0
    %v155 = vadd.f32 %v64, %v154
    %156 = vmatprep.mubr.f32.mxu0 0.0
    %157 = vmatmul.mubr.f32.gmra.mrb[0].mxu0 %v75
    %v158 = vpop.f32.mrb[0].mxu0
    %v159 = vadd.f32 %v60, %v158
    %v160 = vpop.f32.mrb[0].mxu0
    %v161 = vadd.f32 %v64, %v160
    %162 = vmatprep.mubr.f32.mxu0 0.0
    %163 = vmatmul.mubr.f32.gmra.mrb[0].mxu0 %v78
    %v164 = vpop.f32.mrb[0].mxu0
    %v165 = vadd.f32 %v60, %v164
    %v166 = vpop.f32.mrb[0].mxu0
    %v167 = vadd.f32 %v64, %v166
    %168 = vdwg.mxu0
    %v169 = vmul.f32 %v149, 0.5
    %v170 = vmul.f32 %v155, 0.5
    %v171 = vmul.f32 %v161, 0.5
    %v172 = vmul.f32 %v167, 0.5
    %v173 = vmul.f32 %v149, 0.70710677
    %v174 = vmul.f32 %v155, 0.70710677
    %v175 = vmul.f32 %v161, 0.70710677
    %v176 = vmul.f32 %v167, 0.70710677
    %v177 = verf.f32.pop %v173
    %v178 = verf.f32.pop %v174
    %v179 = verf.f32.pop %v175
    %v180 = verf.f32.pop %v176
    %v181 = vadd.f32 %v177, 1.0
    %v182 = vadd.f32 %v178, 1.0
    %v183 = vadd.f32 %v179, 1.0
    %v184 = vadd.f32 %v180, 1.0
    %v185 = vmul.f32 %v169, %v181
    %v186 = vmul.f32 %v170, %v182
    %v187 = vmul.f32 %v171, %v183
    %v188 = vmul.f32 %v172, %v184
    %v189 = vmul.f32 %v147, %v185
    %v190 = vmul.f32 %v153, %v186
    %v191 = vmul.f32 %v159, %v187
    %v192 = vmul.f32 %v165, %v188
    %193 = vst [vmem:[#allocation7] sm:$0xff] %v189
    %194 = vst [vmem:[#allocation7 + $0x8] sm:$0xff] %v190
    %195 = vst [vmem:[#allocation7 + $0x10] sm:$0xff] %v191
    %196 = vst [vmem:[#allocation7 + $0x18] sm:$0xff] %v192
    // Predicated region
    $region22: #{tpu_custom_call.1} parent=1 // pred_check
      _
    $region23: #{tpu_custom_call.1} parent=1 // pred_check_branch
      %198 = sbr.rel (0) target = $region25
    $region24: #{tpu_custom_call.1} parent=1 // pred_region
      %s200 = ssub.s32 512, 512
      %201 = vsyncadd [#allocation4], %s200
      %s202 = sshll.u32 [#allocation7], 4
      %s203 = int_to_ptr.vmem [resolvable:$true] %s202
      %208 = dma.vmem_to_hbm [thread:$0]  %s203, 512, %s3, [#allocation4], 128, 128, 8
    $region25: #{tpu_custom_call.1} parent=1 // pred_fallthru
      _
    // Predicated region
    $region26: #{tpu_custom_call.1} parent=1 // pred_check
      _
    $region27: #{tpu_custom_call.1} parent=1 // pred_check_branch
      %210 = sbr.rel (0) target = $region29
    $region28: #{tpu_custom_call.1} parent=1 // pred_region
      %211 = dma.done [#allocation4], 512
    $region29: #{tpu_custom_call.1} parent=1 // pred_fallthru
      _
    %212 = vsyncpa [#allocation3], 1
    %213 = vsyncpa [#allocation6], 1
    %214 = vsyncpa [#allocation4], 1

</llo_original>
